<compile_context>
chip_gen: v5e
topology: v5e:2x2
jax: 0.10.0
libtpu: 0.0.40
codegen_flags: <defaults>
</compile_context>

<pallas_src>
import functools

import jax
import jax.numpy as jnp
from jax.experimental import pallas as pl
from jax.experimental.pallas import tpu as pltpu

EPS = 1e-5          # nn.InstanceNorm2d default eps
NEG_SLOPE = 0.2     # nn.LeakyReLU(negative_slope=0.2)


def _round_up(x, m):
    return ((x + m - 1) // m) * m


def convnorm_kernel(cols_ref, w_ref, gb_ref, o_ref, *, p_true):
    """Fused conv(matmul) + InstanceNorm2d(affine) + LeakyReLU(0.2).

    grid = (Cout-tiles [parallel], K-tiles [arbitrary reduction]).
    cols_ref: (TK, P_pad) bf16   im2col patches (zero-padded)
    w_ref:    (TC, TK)    bf16   flattened conv weights (zero-padded)
    gb_ref:   (TC, 2)     f32    packed [gamma, beta]
    o_ref:    (TC, P_pad) f32    output block; doubles as the K accumulator
                                 (resident in VMEM across the trailing K axis)
    """
    k = pl.program_id(1)

    @pl.when(k == 0)
    def _():
        o_ref[...] = jnp.zeros_like(o_ref)

    # bf16 x bf16 -> f32 accumulate on the MXU, directly into the output block.
    o_ref[...] += jnp.dot(w_ref[...], cols_ref[...],
                          preferred_element_type=jnp.float32)

    @pl.when(k == pl.num_programs(1) - 1)
    def _():
        y = o_ref[...]                                     # (TC, P_pad) f32
        inv_p = 1.0 / p_true
        # Padded lanes (and padded channel / K rows) are exact zeros, so plain
        # sums over the padded slab are unbiased; divide by the true P.
        mean = jnp.sum(y, axis=1, keepdims=True) * inv_p
        ex2 = jnp.sum(y * y, axis=1, keepdims=True) * inv_p
        var = jnp.maximum(ex2 - mean * mean, 0.0)          # biased variance
        gamma = gb_ref[:, 0:1]
        beta = gb_ref[:, 1:2]
        # InstanceNorm + affine folded into one FMA per element.
        scale = gamma * jax.lax.rsqrt(var + EPS)           # EUP slot (free-ish)
        shift = beta - mean * scale
        z = y * scale + shift
        # LeakyReLU(0.2): max(z, 0.2*z)  (single VPU select-free op)
        o_ref[...] = jnp.maximum(z, NEG_SLOPE * z).astype(o_ref.dtype)


def convnorm_forward(x, w, b, gamma, beta):
    """x: (N, Cin, H, W); w: (Cout, Cin, 3, 3); b/gamma/beta: (Cout,).
    Returns (Cout, H-2, W-2), matching the PyTorch module (out[0] kept)."""
    del b  # conv bias is exactly cancelled by InstanceNorm's mean subtraction
    N, Cin, H, W = x.shape
    Cout = w.shape[0]
    Ho, Wo = H - 2, W - 2
    P = Ho * Wo
    K = Cin * 9

    # ---- layout plumbing (no compute hoisting): im2col on batch element 0 ----
    x0 = x[0]
    patches = []
    for kh in range(3):
        for kw in range(3):
            patches.append(x0[:, kh:kh + Ho, kw:kw + Wo])
    # row index = ci*9 + kh*3 + kw, matching w.reshape(Cout, Cin*9)
    cols = jnp.stack(patches, axis=1).reshape(K, P)
    w_mat = w.reshape(Cout, K)

    # ---- tile / pad sizes (budget-driven so larger shapes still pipeline) ----
    P_pad = _round_up(P, 128)                      # lane-dense stores

    COLS_BUDGET = 4 * 1024 * 1024                  # per cols buffer (bf16, 2x buffered)
    tk_cap = max(128, (COLS_BUDGET // (P_pad * 2)) // 128 * 128)
    K8 = _round_up(K, 8)
    if K8 <= min(512, tk_cap):
        TK = K8                                    # single K tile (last dim = full)
    else:
        TK = min(512, tk_cap)                      # multiple tiles: keep TK % 128 == 0
    K_pad = _round_up(K, TK)

    OUT_BUDGET = 4 * 1024 * 1024                   # resident f32 output block
    tc_cap = max(8, (OUT_BUDGET // (P_pad * 4)) // 8 * 8)
    TC = min(256, _round_up(Cout, 8), tc_cap)      # Cout tile
    C_pad = _round_up(Cout, TC)

    cols_p = jnp.pad(cols, ((0, K_pad - K), (0, P_pad - P))).astype(jnp.bfloat16)
    w_p = jnp.pad(w_mat, ((0, C_pad - Cout), (0, K_pad - K))).astype(jnp.bfloat16)
    gamma_p = jnp.pad(gamma, (0, C_pad - Cout), constant_values=1.0)
    beta_p = jnp.pad(beta, (0, C_pad - Cout))
    gb = jnp.stack([gamma_p, beta_p], axis=1).astype(jnp.float32)   # (C_pad, 2)

    grid = (C_pad // TC, K_pad // TK)

    grid_spec = pltpu.PrefetchScalarGridSpec(
        num_scalar_prefetch=0,
        grid=grid,
        in_specs=[
            pl.BlockSpec((TK, P_pad), lambda i, k: (k, 0)),   # cols
            pl.BlockSpec((TC, TK), lambda i, k: (i, k)),      # weights
            pl.BlockSpec((TC, 2), lambda i, k: (i, 0)),       # gamma/beta (packed)
        ],
        out_specs=pl.BlockSpec((TC, P_pad), lambda i, k: (i, 0)),
    )

    # Rough VMEM footprint (double-buffered inputs + resident/writeback output).
    vmem_est = (2 * TK * P_pad * 2
                + 2 * TC * TK * 2
                + 2 * TC * P_pad * 4
                + 2 * TC * 2 * 4)
    vmem_limit = min(100 * 1024 * 1024,
                     max(32 * 1024 * 1024, int(vmem_est * 1.25)))

    out_flat = pl.pallas_call(
        functools.partial(convnorm_kernel, p_true=float(P)),
        out_shape=jax.ShapeDtypeStruct((C_pad, P_pad), jnp.float32),
        grid_spec=grid_spec,
        compiler_params=pltpu.CompilerParams(
            # Cout axis shards across TensorCores (v7x); K is the reduction.
            dimension_semantics=("parallel", "arbitrary"),
            vmem_limit_bytes=vmem_limit,
        ),
    )(cols_p, w_p, gb)

    return out_flat[:Cout, :P].reshape(Cout, Ho, Wo)


def convnorm_reference(x, w, b, gamma, beta, *, match_bf16=False):
    """Pure-JAX reference mirroring the PyTorch forward semantics.
    match_bf16=True rounds the conv inputs to bf16 (like the kernel's MXU
    inputs) while keeping f32 accumulation, for a tight apples-to-apples check.
    """
    if match_bf16:
        xc = x.astype(jnp.bfloat16).astype(jnp.float32)
        wc = w.astype(jnp.bfloat16).astype(jnp.float32)
    else:
        xc, wc = x, w
    y = jax.lax.conv_general_dilated(
        xc, wc, window_strides=(1, 1), padding="VALID",
        dimension_numbers=("NCHW", "OIHW", "NCHW"),
        precision=jax.lax.Precision.HIGHEST)
    y = y + b[None, :, None, None]
    mean = jnp.mean(y, axis=(2, 3), keepdims=True)
    var = jnp.mean(jnp.square(y - mean), axis=(2, 3), keepdims=True)
    z = (y - mean) / jnp.sqrt(var + EPS)
    z = z * gamma[None, :, None, None] + beta[None, :, None, None]
    z0 = z[0]                                   # out[0] in the PyTorch module
    return jnp.where(z0 > 0, z0, NEG_SLOPE * z0)


if __name__ == "__main__":
    key = jax.random.PRNGKey(0)
    k_x, k_w, k_b, k_g, k_be = jax.random.split(key, 5)

    N, Cin, Cout, H, W = 2, 4, 8, 16, 16
    x = jax.random.normal(k_x, (N, Cin, H, W), jnp.float32)
    # Deterministic synthetic parameters (shapes from Convnorm.__init__,
    # sample='none-3', activ='leaky').
    w = jax.random.normal(k_w, (Cout, Cin, 3, 3), jnp.float32) * 0.1
    b = jax.random.normal(k_b, (Cout,), jnp.float32) * 0.1
    gamma = 1.0 + 0.1 * jax.random.normal(k_g, (Cout,), jnp.float32)
    beta = 0.1 * jax.random.normal(k_be, (Cout,), jnp.float32)

    out = jax.block_until_ready(convnorm_forward(x, w, b, gamma, beta))
    assert out.shape == (Cout, H - 2, W - 2), out.shape

    # Tight check vs a reference whose conv inputs are bf16-rounded exactly
    # like the kernel's MXU inputs (f32 accumulation in both paths).
    ref_bf16 = convnorm_reference(x, w, b, gamma, beta, match_bf16=True)
    assert jnp.allclose(out, ref_bf16, atol=1e-4, rtol=1e-4), \
        "mismatch vs bf16-matched reference"

    # Looser check vs the exact-f32 module math; the only difference is the
    # bf16 quantization of the conv inputs on the MXU.
    ref_f32 = convnorm_reference(x, w, b, gamma, beta, match_bf16=False)
    assert jnp.allclose(out, ref_f32, atol=2e-2, rtol=2e-2), \
        "mismatch vs f32 reference"

    print("KERNEL_OK")
</pallas_src>

<mosaic_0001>
module attributes {stable_mosaic.version = 11 : i64} {
  func.func @convnorm_kernel(%arg0: i32, %arg1: i32, %arg2: memref<40x256xbf16, #tpu.memory_space<vmem>>, %arg3: memref<8x40xbf16, #tpu.memory_space<vmem>>, %arg4: memref<8x2xf32, #tpu.memory_space<vmem>>, %arg5: memref<8x256xf32, #tpu.memory_space<vmem>>) attributes {dimension_semantics = [#tpu.dimension_semantics<parallel>, #tpu.dimension_semantics<arbitrary>], iteration_bounds = array<i64: 1, 1>, scalar_prefetch = 0 : i64, scratch_operands = 0 : i64, tpu.core_type = #tpu.core_type<tc>, window_params = [{transform_indices = @transform_0, window_bounds = array<i64: 40, 256>}, {transform_indices = @transform_1, window_bounds = array<i64: 8, 40>}, {transform_indices = @transform_2, window_bounds = array<i64: 8, 2>}, {transform_indices = @transform_3, window_bounds = array<i64: 8, 256>}]} {
    %c0_i32 = arith.constant 0 : i32
    %0 = arith.cmpi eq, %arg1, %c0_i32 : i32
    %1 = arith.extui %0 : i1 to i32
    %c0_i32_0 = arith.constant 0 : i32
    %2 = arith.cmpi ne, %1, %c0_i32_0 : i32
    scf.if %2 {
      %cst_10 = arith.constant 0.000000e+00 : f32
      %12 = vector.broadcast %cst_10 : f32 to vector<8x256xf32>
      %c0_11 = arith.constant 0 : index
      %c0_12 = arith.constant 0 : index
      %13 = vector.load %arg5[%c0_11, %c0_12] : memref<8x256xf32, #tpu.memory_space<vmem>>, vector<8x256xf32>
      tpu.vector_store %arg5[%c0_11, %c0_12], %12 {strides = array<i32>} : memref<8x256xf32, #tpu.memory_space<vmem>>, vector<8x256xf32>,
    } else {
    }
    %c0 = arith.constant 0 : index
    %c0_1 = arith.constant 0 : index
    %3 = vector.load %arg5[%c0, %c0_1] : memref<8x256xf32, #tpu.memory_space<vmem>>, vector<8x256xf32>
    %c0_2 = arith.constant 0 : index
    %c0_3 = arith.constant 0 : index
    %4 = vector.load %arg3[%c0_2, %c0_3] : memref<8x40xbf16, #tpu.memory_space<vmem>>, vector<8x40xbf16>
    %c0_4 = arith.constant 0 : index
    %c0_5 = arith.constant 0 : index
    %5 = vector.load %arg2[%c0_4, %c0_5] : memref<40x256xbf16, #tpu.memory_space<vmem>>, vector<40x256xbf16>
    %cst = arith.constant dense<0.000000e+00> : vector<8x256xf32>
    %6 = tpu.matmul %4, %5, %cst {dimension_numbers = #tpu.dot_dimension_numbers<[1], [0], [0], [1], [0, 0, 1, 1], [], []>} : vector<8x40xbf16>, vector<40x256xbf16>, vector<8x256xf32> -> vector<8x256xf32>
    %7 = arith.addf %3, %6 : vector<8x256xf32>
    %c0_6 = arith.constant 0 : index
    %c0_7 = arith.constant 0 : index
    %8 = vector.load %arg5[%c0_6, %c0_7] : memref<8x256xf32, #tpu.memory_space<vmem>>, vector<8x256xf32>
    tpu.vector_store %arg5[%c0_6, %c0_7], %7 {strides = array<i32>} : memref<8x256xf32, #tpu.memory_space<vmem>>, vector<8x256xf32>,
    %c0_i32_8 = arith.constant 0 : i32
    %9 = arith.cmpi eq, %arg1, %c0_i32_8 : i32
    %10 = arith.extui %9 : i1 to i32
    %c0_i32_9 = arith.constant 0 : i32
    %11 = arith.cmpi ne, %10, %c0_i32_9 : i32
    scf.if %11 {
      %c0_10 = arith.constant 0 : index
      %c0_11 = arith.constant 0 : index
      %12 = vector.load %arg5[%c0_10, %c0_11] : memref<8x256xf32, #tpu.memory_space<vmem>>, vector<8x256xf32>
      %cst_12 = arith.constant dense<0.000000e+00> : vector<8xf32>
      %13 = vector.multi_reduction <add>, %12, %cst_12 [1] : vector<8x256xf32> to vector<8xf32>
      %14 = vector.shape_cast %13 : vector<8xf32> to vector<8x1xf32>
      %cst_13 = arith.constant 0.00510204071 : f32
      %15 = vector.broadcast %cst_13 : f32 to vector<8x1xf32>
      %16 = arith.mulf %14, %15 : vector<8x1xf32>
      %17 = arith.mulf %12, %12 : vector<8x256xf32>
      %cst_14 = arith.constant dense<0.000000e+00> : vector<8xf32>
      %18 = vector.multi_reduction <add>, %17, %cst_14 [1] : vector<8x256xf32> to vector<8xf32>
      %19 = vector.shape_cast %18 : vector<8xf32> to vector<8x1xf32>
      %cst_15 = arith.constant 0.00510204071 : f32
      %20 = vector.broadcast %cst_15 : f32 to vector<8x1xf32>
      %21 = arith.mulf %19, %20 : vector<8x1xf32>
      %22 = arith.mulf %16, %16 : vector<8x1xf32>
      %23 = arith.subf %21, %22 : vector<8x1xf32>
      %cst_16 = arith.constant 0.000000e+00 : f32
      %24 = vector.broadcast %cst_16 : f32 to vector<8x1xf32>
      %25 = arith.maximumf %23, %24 : vector<8x1xf32>
      %c0_17 = arith.constant 0 : index
      %c0_18 = arith.constant 0 : index
      %26 = vector.load %arg4[%c0_17, %c0_18] : memref<8x2xf32, #tpu.memory_space<vmem>>, vector<8x1xf32>
      %c0_19 = arith.constant 0 : index
      %c1 = arith.constant 1 : index
      %27 = vector.load %arg4[%c0_19, %c1] : memref<8x2xf32, #tpu.memory_space<vmem>>, vector<8x1xf32>
      %cst_20 = arith.constant 9.99999974E-6 : f32
      %28 = vector.broadcast %cst_20 : f32 to vector<8x1xf32>
      %29 = arith.addf %25, %28 : vector<8x1xf32>
      %30 = math.rsqrt %29 : vector<8x1xf32>
      %31 = arith.mulf %26, %30 : vector<8x1xf32>
      %32 = arith.mulf %16, %31 : vector<8x1xf32>
      %33 = arith.subf %27, %32 : vector<8x1xf32>
      %34 = vector.broadcast %31 : vector<8x1xf32> to vector<8x256xf32>
      %35 = arith.mulf %12, %34 : vector<8x256xf32>
      %36 = vector.broadcast %33 : vector<8x1xf32> to vector<8x256xf32>
      %37 = arith.addf %35, %36 : vector<8x256xf32>
      %cst_21 = arith.constant 2.000000e-01 : f32
      %38 = vector.broadcast %cst_21 : f32 to vector<8x256xf32>
      %39 = arith.mulf %38, %37 : vector<8x256xf32>
      %40 = arith.maximumf %37, %39 : vector<8x256xf32>
      %c0_22 = arith.constant 0 : index
      %c0_23 = arith.constant 0 : index
      %41 = vector.load %arg5[%c0_22, %c0_23] : memref<8x256xf32, #tpu.memory_space<vmem>>, vector<8x256xf32>
      tpu.vector_store %arg5[%c0_22, %c0_23], %40 {strides = array<i32>} : memref<8x256xf32, #tpu.memory_space<vmem>>, vector<8x256xf32>,
    } else {
    }
    return
  }
  func.func @transform_0(%arg0: i32, %arg1: i32) -> (i32, i32) {
    %c0_i32 = arith.constant 0 : i32
    %c0_i32_0 = arith.constant 0 : i32
    return %arg1, %c0_i32 : i32, i32
  }
  func.func @transform_1(%arg0: i32, %arg1: i32) -> (i32, i32) {
    %c0_i32 = arith.constant 0 : i32
    return %arg0, %arg1 : i32, i32
  }
  func.func @transform_2(%arg0: i32, %arg1: i32) -> (i32, i32) {
    %c0_i32 = arith.constant 0 : i32
    %c0_i32_0 = arith.constant 0 : i32
    return %arg0, %c0_i32 : i32, i32
  }
  func.func @transform_3(%arg0: i32, %arg1: i32) -> (i32, i32) {
    %c0_i32 = arith.constant 0 : i32
    %c0_i32_0 = arith.constant 0 : i32
    return %arg0, %c0_i32 : i32, i32
  }
}

</mosaic_0001>

<llo_original>
// kernel: tpu_custom_call.1
$region0: #{tpu_custom_call.1}
  #allocation0 [shape = 'u32[]', space=smem, size = 0x4, offset = 0x4, fixed_abs, tag = 'smem constant byte address 0x4 - core index']
  #allocation1 [shape = 'u32[72,128]{1,0:T(1,128)}', space=vmem, size = 0x9000, scoped, tag = 'internal scratch']
  %s0 = inlined_call_operand.hbm [shape: bf16[40,256], index: 0, kind: input, shape index: {}]
  %s1 = inlined_call_operand.vmem [shape: bf16[8,40], index: 1, kind: input, shape index: {}]
  %s2 = inlined_call_operand.vmem [shape: f32[8,2], index: 2, kind: input, shape index: {}]
  %s3 = inlined_call_operand.hbm [shape: f32[8,256], index: 3, kind: output, shape index: {}]
  %s4 = sld [smem:[#allocation0]]
  $region34: #{tpu_custom_call.1} parent=0
    _
  %s6 = ssub.s32 1, %s4
  %s7 = scalar_select 0, %s6, %s4
  $region1: #{tpu_custom_call.1} parent=0
    #allocation2 [shape = 'u8[20480]{0}', space=vmem, size = 0x5000, scoped, tag = 'input window, operand 0, single buffered']
    #allocation3 [shape = 's32[1]{0}', space=sflag, size = 0x4, scoped, tag = 'scoped memory for tpu_custom_call.1']
    #allocation4 [shape = 's32[1]{0}', space=sflag, size = 0x4, scoped, tag = 'scoped memory for tpu_custom_call.1']
    #allocation5 [shape = 'u8[8192]{0}', space=vmem, size = 0x2000, scoped, tag = 'output window, operand 0, single buffered']
    %8 = vsyncpa [#allocation3], 0
    %9 = vsyncpa [#allocation4], 0
    // Predicated region
    $region2: #{tpu_custom_call.1} parent=1 // pred_check
      _
    $region3: #{tpu_custom_call.1} parent=1 // pred_check_branch
      %11 = sbr.rel (0) target = $region5
    $region4: #{tpu_custom_call.1} parent=1 // pred_region
      %13 = vsyncadd [#allocation3], 0
      %s14 = sshll.u32 %s0, 4
      %s15 = int_to_ptr.hbm [resolvable:$true] %s14
      %s16 = sshll.u32 [#allocation2], 4
      %s17 = int_to_ptr.vmem [resolvable:$true] %s16
      %22 = dma.hbm_to_vmem [thread:$0]  %s15, 640, %s17, [#allocation3], 128, 128, 8
    $region5: #{tpu_custom_call.1} parent=1 // pred_fallthru
      _
    // Predicated region
    $region6: #{tpu_custom_call.1} parent=1 // pred_check
      _
    $region7: #{tpu_custom_call.1} parent=1 // pred_check_branch
      %24 = sbr.rel (0) target = $region9
    $region8: #{tpu_custom_call.1} parent=1 // pred_region
      _
    $region9: #{tpu_custom_call.1} parent=1 // pred_fallthru
      _
    // Predicated region
    $region10: #{tpu_custom_call.1} parent=1 // pred_check
      _
    $region11: #{tpu_custom_call.1} parent=1 // pred_check_branch
      %26 = sbr.rel (0) target = $region13
    $region12: #{tpu_custom_call.1} parent=1 // pred_region
      _
    $region13: #{tpu_custom_call.1} parent=1 // pred_fallthru
      _
    // Predicated region
    $region14: #{tpu_custom_call.1} parent=1 // pred_check
      _
    $region15: #{tpu_custom_call.1} parent=1 // pred_check_branch
      %28 = sbr.rel (0) target = $region17
    $region16: #{tpu_custom_call.1} parent=1 // pred_region
      %30 = dma.done [#allocation3], 640
    $region17: #{tpu_custom_call.1} parent=1 // pred_fallthru
      _
    %p32 = scmp.eq.s32.totalorder 0, 0
    // Predicated region
    $region18: #{tpu_custom_call.1} parent=1 // pred_check
      %p33 = pneg %p32
    $region19: #{tpu_custom_call.1} parent=1 // pred_check_branch
      %35 = sbr.rel (%p33) target = $region21
    $region20: #{tpu_custom_call.1} parent=1 // pred_region
      %36 = vst [vmem:[#allocation5] sm:$0xff] 0.0
      %37 = vst [vmem:[#allocation5 + $0x8] sm:$0xff] 0.0
    $region21: #{tpu_custom_call.1} parent=1 // pred_fallthru
      _
    %v38 = vld [vmem:[#allocation5] sm:$0xff]
    %v39 = vld [vmem:[#allocation5 + $0x8] sm:$0xff]
    %v40 = vld [vmem:[%s1] sm:$0xf]
    %v41 = vld [vmem:[#allocation2] sm:$0xff]
    %v42 = vld [vmem:[#allocation2 + $0x8] sm:$0xff]
    %v43 = vld [vmem:[#allocation2 + $0x10] sm:$0xff]
    %v44 = vld [vmem:[#allocation2 + $0x18] sm:$0xff]
    %v45 = vld [vmem:[#allocation2 + $0x20] sm:$0xff]
    %v51 = vunpack.c.l.b16 %v41
    %v52 = vunpack.c.h.b16 %v41
    %v53 = vunpack.c.l.b16 %v42
    %v54 = vunpack.c.h.b16 %v42
    %v55 = vunpack.c.l.b16 %v43
    %v56 = vunpack.c.h.b16 %v43
    %v57 = vunpack.c.l.b16 %v44
    %v58 = vunpack.c.h.b16 %v44
    %v59 = vunpack.c.l.b16 %v45
    %v60 = vunpack.c.h.b16 %v45
    %v61 = vpack.c.b16 %v53, %v51
    %v62 = vpack.c.b16 %v54, %v52
    %v63 = vpack.c.b16 %v57, %v55
    %v64 = vpack.c.b16 %v58, %v56
    %v65 = vpack.c.b16 %v59, %v59
    %v66 = vpack.c.b16 %v60, %v60
    %vm71 = vcmask 326656
    %v73 = vsel %vm71, %v40, 0
    %vm75 = vcmask 1043456
    %v77 = vsel %vm75, %v65, 0
    %v80 = vsel %vm75, %v66, 0
    %82 = vmatpush.bf16.msra.mxu0 0
    %83 = vmatpush.bf16.msra.mxu0 0
    %84 = vmatpush.bf16.msra.mxu0 0
    %85 = vmatpush.bf16.msra.mxu0 0
    %86 = vmatpush.bf16.msra.mxu0 0
    %87 = vmatpush.bf16.msra.mxu0 %v77
    %88 = vmatpush.bf16.msra.mxu0 %v63
    %89 = vmatpush.bf16.msra.mxu0 %v61
    %90 = vmatmul.bf16.gmra.mxu0 %v73
    %v91 = vpop.f32.mrf.mxu0
    %v92 = vadd.f32 0.0, %v91
    %v93 = vpop.f32.mrf.mxu0
    %94 = vdwg.mxu0
    %95 = vmatpush.bf16.msra.mxu0 0
    %96 = vmatpush.bf16.msra.mxu0 0
    %97 = vmatpush.bf16.msra.mxu0 0
    %98 = vmatpush.bf16.msra.mxu0 0
    %99 = vmatpush.bf16.msra.mxu0 0
    %100 = vmatpush.bf16.msra.mxu0 %v80
    %101 = vmatpush.bf16.msra.mxu0 %v64
    %102 = vmatpush.bf16.msra.mxu0 %v62
    %103 = vmatmul.bf16.gmra.mxu0 %v73
    %v104 = vpop.f32.mrf.mxu0
    %v105 = vadd.f32 0.0, %v104
    %v106 = vpop.f32.mrf.mxu0
    %107 = vdwg.mxu0
    %v108 = vadd.f32 %v38, %v92
    %v109 = vadd.f32 %v39, %v105
    %110 = vst [vmem:[#allocation5] sm:$0xff] %v108
    %111 = vst [vmem:[#allocation5 + $0x8] sm:$0xff] %v109
    // Predicated region
    $region22: #{tpu_custom_call.1} parent=1 // pred_check
      %p112 = pneg %p32
    $region23: #{tpu_custom_call.1} parent=1 // pred_check_branch
      %114 = sbr.rel (%p112) target = $region25
    $region24: #{tpu_custom_call.1} parent=1 // pred_region
      %v115 = vld [vmem:[#allocation5] sm:$0xff]
      %v116 = vld [vmem:[#allocation5 + $0x8] sm:$0xff]
      %v117 = vadd.f32 %v115, %v116
      %118 = vadd.xlane.f32.xlu0 %v117
      %v119 = vpop.xlane.xlu0 %118
      %v120 = vmul.f32 %v119, 0.0051020407
      %v121 = vmul.f32 %v115, %v115
      %v122 = vmul.f32 %v116, %v116
      %v123 = vadd.f32 %v121, %v122
      %124 = vadd.xlane.f32.xlu0 %v123
      %v125 = vpop.xlane.xlu0 %124
      %v126 = vmul.f32 %v125, 0.0051020407
      %v127 = vmul.f32 %v120, %v120
      %v128 = vsub.f32 %v126, %v127
      %v129 = vmax.f32 %v128, 0.0
      %v130 = vld [vmem:[%s2] sm:$0xff]
      %v131 = vadd.f32 %v129, 1e-05
      %v132 = vrsqrt.pop %v131
      %v133 = vmul.f32 %v132, %v131
      %v134 = vmul.f32 %v133, %v132
      %v135 = vmul.f32 0.5, %v134
      %v136 = vsub.f32 1.5, %v135
      %v137 = vmul.f32 %v132, %v136
      %vm138 = vweird.f32 %v131
      %vm139 = vweird.f32 %v132
      %vm140 = vmor %vm138, %vm139
      %v141 = vsel %vm140, %v132, %v137
      %v142 = vmul.f32 %v130, %v141
      %v143 = vmul.f32 %v120, %v142
      %145 = vrot.lane.b32.xlu0 %v143, 1
      %v146 = vpop.permute.xlu0 %145
      %v148 = vsub.f32 %v130, %v146
      %150 = vset.pattern.permute.xlu0 0
      %151 = vperm.xlu0 %150, %v142
      %v152 = vpop.permute.xlu0 %151
      %v154 = vmul.f32 %v115, %v152
      %v155 = vmul.f32 %v116, %v152
      %157 = vset.pattern.permute.xlu0 1
      %158 = vperm.xlu0 %157, %v148
      %v159 = vpop.permute.xlu0 %158
      %v161 = vadd.f32 %v154, %v159
      %v162 = vadd.f32 %v155, %v159
      %v163 = vmul.f32 %v161, 0.2
      %v164 = vmul.f32 %v162, 0.2
      %v165 = vmax.f32 %v161, %v163
      %v166 = vmax.f32 %v162, %v164
      %167 = vst [vmem:[#allocation5] sm:$0xff] %v165
      %168 = vst [vmem:[#allocation5 + $0x8] sm:$0xff] %v166
    $region25: #{tpu_custom_call.1} parent=1 // pred_fallthru
      _
    // Predicated region
    $region26: #{tpu_custom_call.1} parent=1 // pred_check
      _
    $region27: #{tpu_custom_call.1} parent=1 // pred_check_branch
      %170 = sbr.rel (0) target = $region29
    $region28: #{tpu_custom_call.1} parent=1 // pred_region
      %172 = vsyncadd [#allocation4], 0
      %s174 = sshll.u32 [#allocation5], 4
      %s175 = int_to_ptr.vmem [resolvable:$true] %s174
      %s176 = sshll.u32 %s3, 4
      %s177 = int_to_ptr.hbm [resolvable:$true] %s176
      %179 = dma.vmem_to_hbm [thread:$0]  %s175, 256, %s177, [#allocation4]
    $region29: #{tpu_custom_call.1} parent=1 // pred_fallthru
      _
    // Predicated region
    $region30: #{tpu_custom_call.1} parent=1 // pred_check
      _
    $region31: #{tpu_custom_call.1} parent=1 // pred_check_branch
      %181 = sbr.rel (0) target = $region33
    $region32: #{tpu_custom_call.1} parent=1 // pred_region
      %183 = dma.done [#allocation4], 256
    $region33: #{tpu_custom_call.1} parent=1 // pred_fallthru
      _
    %184 = vsyncpa [#allocation3], 1
    %185 = vsyncpa [#allocation4], 1

</llo_original>
